<compile_context>
chip_gen: v7x
topology: tpu7x:2x2x1
jax: 0.10.0
libtpu: 0.0.40
codegen_flags: <defaults>
</compile_context>

<pallas_src>
import numpy as np
import jax
import jax.numpy as jnp
from jax import lax
from jax.experimental import pallas as pl
from jax.experimental.pallas import tpu as pltpu

PRIME = (1 << 31) - 1  # Mersenne prime used by the synthetic PolyHash


# ----------------------------- Pallas kernel ------------------------------ #
def hemb_kernel(idx0_t_ref, w_t_ref, table_t_ref, out_t_ref):
    """One batch tile (transposed layout, batch on the lane axis).

    Builds S_T[r, b] = sum_h w[h, b] * (idx0[h, b] == r)   # (Btab, TB)
    then   out_T     = table_T @ S_T                       # (dim, TB)
    """
    idx0_t = idx0_t_ref[...]          # (n_hash, TB) int32
    w_t = w_t_ref[...]                # (n_hash, TB) f32 (pre-gathered weights)
    table_t = table_t_ref[...]        # (dim, Btab) f32

    n_hash, TB = idx0_t.shape
    Btab = table_t.shape[1]

    iota_rows = lax.broadcasted_iota(jnp.int32, (Btab, TB), 0)

    s_t = jnp.zeros((Btab, TB), jnp.float32)
    for h in range(n_hash):           # n_hash is small & static: unrolled
        i0_h = idx0_t[h:h + 1, :]     # (1, TB) -> broadcast over table rows
        w_h = w_t[h:h + 1, :]         # (1, TB)
        s_t = s_t + jnp.where(i0_h == iota_rows, w_h, 0.0)

    # MXU matmul: M=dim, K=Btab, N=TB (>=128, lane-dense output store).
    out_t_ref[...] = jnp.dot(table_t, s_t, preferred_element_type=jnp.float32)


def hash_embedding_forward(idx0, idx1, weights_flat, table, *, tile_b=128):
    """Forward pass. idx0: (N, n_hash) int32, idx1: (N, n_hash) int32,
    weights_flat: (K*n_hash,) f32, table: (Btab, dim) f32 -> (N, dim) f32."""
    NB, n_hash = idx0.shape
    Btab, dim = table.shape

    # Pre-gather the per-(sample, hash) scalar weights with a cheap XLA gather;
    # this removes the dominant VPU/XLU one-hot weight lookup from the kernel.
    w = jnp.take(weights_flat, idx1, axis=0).astype(jnp.float32)   # (NB, n_hash)

    # Pad the batch up to a tile multiple instead of asserting.
    nb_pad = pl.cdiv(NB, tile_b) * tile_b
    pad = nb_pad - NB
    if pad:
        idx0 = jnp.pad(idx0, ((0, pad), (0, 0)))   # padded rows hit row 0; sliced off below
        w = jnp.pad(w, ((0, pad), (0, 0)))

    # Transpose so the (large) batch dimension sits on the lane axis everywhere.
    idx0_t = idx0.T                    # (n_hash, nb_pad)
    w_t = w.T                          # (n_hash, nb_pad)
    table_t = table.T.astype(jnp.float32)  # (dim, Btab), tiny, resident across the grid

    grid = (nb_pad // tile_b,)
    out_t = pl.pallas_call(
        hemb_kernel,
        out_shape=jax.ShapeDtypeStruct((dim, nb_pad), jnp.float32),
        grid_spec=pltpu.PrefetchScalarGridSpec(
            num_scalar_prefetch=0,
            grid=grid,
            in_specs=[
                pl.BlockSpec((n_hash, tile_b), lambda i: (0, i)),  # idx0 (transposed)
                pl.BlockSpec((n_hash, tile_b), lambda i: (0, i)),  # gathered weights (T)
                pl.BlockSpec((dim, Btab), lambda i: (0, 0)),       # table (transposed)
            ],
            out_specs=pl.BlockSpec((dim, tile_b), lambda i: (0, i)),
        ),
        compiler_params=pltpu.CompilerParams(
            dimension_semantics=("parallel",)),
    )(idx0_t, w_t, table_t)

    # Layout plumbing back to (N, dim); drop the batch padding.
    return out_t.T[:NB]


# ------------------------------ host glue --------------------------------- #
def poly_hash_np(x, coeffs, output_range):
    """x: (N,) int64, coeffs: (n_hash, 2) int64 -> (N, n_hash) int32 in [0, range)."""
    a = coeffs[:, 0][None, :]
    b = coeffs[:, 1][None, :]
    h = ((a * x[:, None] + b) % PRIME) % output_range
    return h.astype(np.int32)


def reference_np(idx0, idx1, table, weights_flat):
    vecs = table[idx0]                        # (N, n_hash, dim)
    w = weights_flat[idx1][:, None, :]        # (N, 1, n_hash)
    return np.matmul(w, vecs).squeeze(1)      # (N, dim)


if __name__ == "__main__":
    # Module hyper-params (METHOD_FLAT)
    num_params = 2048
    dim = 32
    n_hash = 4
    B = max(num_params // (2 * dim), 1)        # 32 table rows
    K = max(num_params // (2 * n_hash), 1)     # 256
    KH = K * n_hash                            # 1024 flat weights
    assert B * dim + KH <= num_params

    batch = 16
    key = jax.random.PRNGKey(0)
    k_tab, k_w, k_x, k_h0, k_h1 = jax.random.split(key, 5)

    # Parameters (deterministic, matching reset_parameters ranges)
    table = jax.random.uniform(k_tab, (B, dim), jnp.float32,
                               minval=-dim ** -0.5, maxval=dim ** -0.5)
    weights_flat = jax.random.uniform(k_w, (KH,), jnp.float32, minval=-1.0, maxval=1.0)

    # Input ids and PolyHash coefficients (hashing done host-side in int64)
    x = jax.random.randint(k_x, (batch,), 0, 1_000_000, dtype=jnp.int32)
    c0 = jax.random.randint(k_h0, (n_hash, 2), 1, 2 ** 30, dtype=jnp.int32)
    c1 = jax.random.randint(k_h1, (n_hash, 2), 1, 2 ** 30, dtype=jnp.int32)

    x_np = np.asarray(x, dtype=np.int64)
    idx0_np = poly_hash_np(x_np, np.asarray(c0, dtype=np.int64), B)     # hash0 -> table rows
    idx1_np = poly_hash_np(x_np, np.asarray(c1, dtype=np.int64), KH)    # hash1 -> flat weights

    idx0 = jnp.asarray(idx0_np)
    idx1 = jnp.asarray(idx1_np)

    out = hash_embedding_forward(idx0, idx1, weights_flat, table, tile_b=128)
    out = jax.block_until_ready(out)

    ref = reference_np(idx0_np, idx1_np, np.asarray(table), np.asarray(weights_flat))
    np.testing.assert_allclose(np.asarray(out), ref, rtol=1e-5, atol=1e-5)
    print("KERNEL_OK")
</pallas_src>

<mosaic_0001>
module attributes {stable_mosaic.version = 11 : i64} {
  func.func @hemb_kernel(%arg0: i32, %arg1: memref<4x128xi32, #tpu.memory_space<vmem>>, %arg2: memref<4x128xf32, #tpu.memory_space<vmem>>, %arg3: memref<32x32xf32, #tpu.memory_space<vmem>>, %arg4: memref<32x128xf32, #tpu.memory_space<vmem>>) attributes {dimension_semantics = [#tpu.dimension_semantics<parallel>], iteration_bounds = array<i64: 1>, scalar_prefetch = 0 : i64, scratch_operands = 0 : i64, tpu.core_type = #tpu.core_type<tc>, window_params = [{transform_indices = @transform_0, window_bounds = array<i64: 4, 128>}, {transform_indices = @transform_1, window_bounds = array<i64: 4, 128>}, {pipeline_mode = #tpu.pipeline_mode<synchronous>, transform_indices = @transform_2, window_bounds = array<i64: 32, 32>}, {transform_indices = @transform_3, window_bounds = array<i64: 32, 128>}]} {
    %c0 = arith.constant 0 : index
    %c0_0 = arith.constant 0 : index
    %0 = vector.load %arg1[%c0, %c0_0] : memref<4x128xi32, #tpu.memory_space<vmem>>, vector<4x128xi32>
    %c0_1 = arith.constant 0 : index
    %c0_2 = arith.constant 0 : index
    %1 = vector.load %arg2[%c0_1, %c0_2] : memref<4x128xf32, #tpu.memory_space<vmem>>, vector<4x128xf32>
    %c0_3 = arith.constant 0 : index
    %c0_4 = arith.constant 0 : index
    %2 = vector.load %arg3[%c0_3, %c0_4] : memref<32x32xf32, #tpu.memory_space<vmem>>, vector<32x32xf32>
    %3 = tpu.iota {dimensions = array<i32: 0>} : vector<32x128xi32>
    %cst = arith.constant 0.000000e+00 : f32
    %4 = vector.broadcast %cst : f32 to vector<32x128xf32>
    %5 = vector.extract_strided_slice %0 {offsets = [0, 0], sizes = [1, 128], strides = [1, 1]} : vector<4x128xi32> to vector<1x128xi32>
    %6 = vector.extract_strided_slice %1 {offsets = [0, 0], sizes = [1, 128], strides = [1, 1]} : vector<4x128xf32> to vector<1x128xf32>
    %7 = vector.broadcast %5 : vector<1x128xi32> to vector<32x128xi32>
    %8 = arith.cmpi eq, %7, %3 : vector<32x128xi32>
    %cst_5 = arith.constant 0.000000e+00 : f32
    %9 = vector.shape_cast %6 : vector<1x128xf32> to vector<1x128xf32>
    %10 = vector.broadcast %9 : vector<1x128xf32> to vector<32x128xf32>
    %11 = vector.broadcast %cst_5 : f32 to vector<32x128xf32>
    %12 = arith.select %8, %10, %11 : vector<32x128xi1>, vector<32x128xf32>
    %13 = arith.addf %4, %12 : vector<32x128xf32>
    %14 = vector.extract_strided_slice %0 {offsets = [1, 0], sizes = [1, 128], strides = [1, 1]} : vector<4x128xi32> to vector<1x128xi32>
    %15 = vector.extract_strided_slice %1 {offsets = [1, 0], sizes = [1, 128], strides = [1, 1]} : vector<4x128xf32> to vector<1x128xf32>
    %16 = vector.broadcast %14 : vector<1x128xi32> to vector<32x128xi32>
    %17 = arith.cmpi eq, %16, %3 : vector<32x128xi32>
    %cst_6 = arith.constant 0.000000e+00 : f32
    %18 = vector.shape_cast %15 : vector<1x128xf32> to vector<1x128xf32>
    %19 = vector.broadcast %18 : vector<1x128xf32> to vector<32x128xf32>
    %20 = vector.broadcast %cst_6 : f32 to vector<32x128xf32>
    %21 = arith.select %17, %19, %20 : vector<32x128xi1>, vector<32x128xf32>
    %22 = arith.addf %13, %21 : vector<32x128xf32>
    %23 = vector.extract_strided_slice %0 {offsets = [2, 0], sizes = [1, 128], strides = [1, 1]} : vector<4x128xi32> to vector<1x128xi32>
    %24 = vector.extract_strided_slice %1 {offsets = [2, 0], sizes = [1, 128], strides = [1, 1]} : vector<4x128xf32> to vector<1x128xf32>
    %25 = vector.broadcast %23 : vector<1x128xi32> to vector<32x128xi32>
    %26 = arith.cmpi eq, %25, %3 : vector<32x128xi32>
    %cst_7 = arith.constant 0.000000e+00 : f32
    %27 = vector.shape_cast %24 : vector<1x128xf32> to vector<1x128xf32>
    %28 = vector.broadcast %27 : vector<1x128xf32> to vector<32x128xf32>
    %29 = vector.broadcast %cst_7 : f32 to vector<32x128xf32>
    %30 = arith.select %26, %28, %29 : vector<32x128xi1>, vector<32x128xf32>
    %31 = arith.addf %22, %30 : vector<32x128xf32>
    %32 = vector.extract_strided_slice %0 {offsets = [3, 0], sizes = [1, 128], strides = [1, 1]} : vector<4x128xi32> to vector<1x128xi32>
    %33 = vector.extract_strided_slice %1 {offsets = [3, 0], sizes = [1, 128], strides = [1, 1]} : vector<4x128xf32> to vector<1x128xf32>
    %34 = vector.broadcast %32 : vector<1x128xi32> to vector<32x128xi32>
    %35 = arith.cmpi eq, %34, %3 : vector<32x128xi32>
    %cst_8 = arith.constant 0.000000e+00 : f32
    %36 = vector.shape_cast %33 : vector<1x128xf32> to vector<1x128xf32>
    %37 = vector.broadcast %36 : vector<1x128xf32> to vector<32x128xf32>
    %38 = vector.broadcast %cst_8 : f32 to vector<32x128xf32>
    %39 = arith.select %35, %37, %38 : vector<32x128xi1>, vector<32x128xf32>
    %40 = arith.addf %31, %39 : vector<32x128xf32>
    %cst_9 = arith.constant dense<0.000000e+00> : vector<32x128xf32>
    %41 = tpu.matmul %2, %40, %cst_9 {dimension_numbers = #tpu.dot_dimension_numbers<[1], [0], [0], [1], [0, 0, 1, 1], [], []>} : vector<32x32xf32>, vector<32x128xf32>, vector<32x128xf32> -> vector<32x128xf32>
    %c0_10 = arith.constant 0 : index
    %c0_11 = arith.constant 0 : index
    %42 = vector.load %arg4[%c0_10, %c0_11] : memref<32x128xf32, #tpu.memory_space<vmem>>, vector<32x128xf32>
    tpu.vector_store %arg4[%c0_10, %c0_11], %41 {strides = array<i32>} : memref<32x128xf32, #tpu.memory_space<vmem>>, vector<32x128xf32>,
    return
  }
  func.func @transform_0(%arg0: i32) -> (i32, i32) {
    %c0_i32 = arith.constant 0 : i32
    %c0_i32_0 = arith.constant 0 : i32
    return %c0_i32, %arg0 : i32, i32
  }
  func.func @transform_1(%arg0: i32) -> (i32, i32) {
    %c0_i32 = arith.constant 0 : i32
    %c0_i32_0 = arith.constant 0 : i32
    return %c0_i32, %arg0 : i32, i32
  }
  func.func @transform_2(%arg0: i32) -> (i32, i32) {
    %c0_i32 = arith.constant 0 : i32
    %c0_i32_0 = arith.constant 0 : i32
    %c0_i32_1 = arith.constant 0 : i32
    return %c0_i32, %c0_i32_0 : i32, i32
  }
  func.func @transform_3(%arg0: i32) -> (i32, i32) {
    %c0_i32 = arith.constant 0 : i32
    %c0_i32_0 = arith.constant 0 : i32
    return %c0_i32, %arg0 : i32, i32
  }
}

</mosaic_0001>

<llo_original>
// kernel: tpu_custom_call.1
$region0: #{tpu_custom_call.1}
  #allocation0 [shape = 'u32[]', space=smem, size = 0x4, offset = 0x4, fixed_abs, tag = 'smem constant byte address 0x4 - core index']
  #allocation1 [shape = 'u32[144,128]{1,0:T(1,128)}', space=vmem, size = 0x12000, scoped, tag = 'internal scratch']
  %s0 = inlined_call_operand.hbm [shape: s32[4,128], index: 0, kind: input, shape index: {}]
  %s1 = inlined_call_operand.hbm [shape: f32[4,128], index: 1, kind: input, shape index: {}]
  %s2 = inlined_call_operand.hbm [shape: f32[32,32], index: 2, kind: input, shape index: {}]
  %s3 = inlined_call_operand.hbm [shape: f32[32,128], index: 3, kind: output, shape index: {}]
  %s4 = sld [smem:[#allocation0]]
  $region34: #{tpu_custom_call.1} parent=0
    _
  %s6 = ssub.s32 1, %s4
  %s7 = scalar_select 0, %s6, %s4
  $region1: #{tpu_custom_call.1} parent=0
    #allocation2 [shape = 'u8[2048]{0}', space=vmem, size = 0x800, scoped, tag = 'input window, operand 0, single buffered']
    #allocation3 [shape = 's32[1]{0}', space=sflag, size = 0x4, scoped, tag = 'scoped memory for tpu_custom_call.1']
    #allocation4 [shape = 's32[1]{0}', space=sflag, size = 0x4, scoped, tag = 'scoped memory for tpu_custom_call.1']
    #allocation5 [shape = 'u8[2048]{0}', space=vmem, size = 0x800, scoped, tag = 'input window, operand 1, single buffered']
    #allocation6 [shape = 's32[1]{0}', space=sflag, size = 0x4, scoped, tag = 'scoped memory for tpu_custom_call.1']
    #allocation7 [shape = 'u8[16384]{0}', space=vmem, size = 0x4000, scoped, tag = 'input window, operand 2, single buffered']
    #allocation8 [shape = 'u8[16384]{0}', space=vmem, size = 0x4000, scoped, tag = 'output window, operand 0, single buffered']
    %8 = vsyncpa [#allocation3], 0
    %9 = vsyncpa [#allocation6], 0
    %10 = vsyncpa [#allocation4], 0
    // Predicated region
    $region2: #{tpu_custom_call.1} parent=1 // pred_check
      _
    $region3: #{tpu_custom_call.1} parent=1 // pred_check_branch
      %12 = sbr.rel (0) target = $region5
    $region4: #{tpu_custom_call.1} parent=1 // pred_region
      %s14 = ssub.s32 64, 64
      %15 = vsyncadd [#allocation3], %s14
      %s17 = sshll.u32 [#allocation2], 4
      %s18 = int_to_ptr.vmem [resolvable:$true] %s17
      %20 = dma.hbm_to_vmem [thread:$0]  %s0, 64, %s18, [#allocation3]
    $region5: #{tpu_custom_call.1} parent=1 // pred_fallthru
      _
    // Predicated region
    $region6: #{tpu_custom_call.1} parent=1 // pred_check
      _
    $region7: #{tpu_custom_call.1} parent=1 // pred_check_branch
      %22 = sbr.rel (0) target = $region9
    $region8: #{tpu_custom_call.1} parent=1 // pred_region
      %s24 = ssub.s32 64, 64
      %25 = vsyncadd [#allocation6], %s24
      %s27 = sshll.u32 [#allocation5], 4
      %s28 = int_to_ptr.vmem [resolvable:$true] %s27
      %30 = dma.hbm_to_vmem [thread:$0]  %s1, 64, %s28, [#allocation6]
    $region9: #{tpu_custom_call.1} parent=1 // pred_fallthru
      _
    // Predicated region
    $region10: #{tpu_custom_call.1} parent=1 // pred_check
      _
    $region11: #{tpu_custom_call.1} parent=1 // pred_check_branch
      %32 = sbr.rel (0) target = $region13
    $region12: #{tpu_custom_call.1} parent=1 // pred_region
      %s34 = ssub.s32 512, 512
      %35 = vsyncadd [#allocation6], %s34
      %s36 = sshll.u32 [#allocation7], 4
      %s37 = int_to_ptr.vmem [resolvable:$true] %s36
      %42 = dma.hbm_to_vmem [thread:$0]  %s2, 512, %s37, [#allocation6], 128, 128, 8
    $region13: #{tpu_custom_call.1} parent=1 // pred_fallthru
      _
    // Predicated region
    $region14: #{tpu_custom_call.1} parent=1 // pred_check
      _
    $region15: #{tpu_custom_call.1} parent=1 // pred_check_branch
      %44 = sbr.rel (0) target = $region17
    $region16: #{tpu_custom_call.1} parent=1 // pred_region
      %45 = dma.done [#allocation3], 64
    $region17: #{tpu_custom_call.1} parent=1 // pred_fallthru
      _
    // Predicated region
    $region18: #{tpu_custom_call.1} parent=1 // pred_check
      _
    $region19: #{tpu_custom_call.1} parent=1 // pred_check_branch
      %47 = sbr.rel (0) target = $region21
    $region20: #{tpu_custom_call.1} parent=1 // pred_region
      %48 = dma.done [#allocation6], 64
    $region21: #{tpu_custom_call.1} parent=1 // pred_fallthru
      _
    // Predicated region
    $region22: #{tpu_custom_call.1} parent=1 // pred_check
      _
    $region23: #{tpu_custom_call.1} parent=1 // pred_check_branch
      %50 = sbr.rel (0) target = $region25
    $region24: #{tpu_custom_call.1} parent=1 // pred_region
      %51 = dma.done [#allocation6], 512
    $region25: #{tpu_custom_call.1} parent=1 // pred_fallthru
      _
    %v52 = vld [vmem:[#allocation2] sm:$0xf]
    %v53 = vld [vmem:[#allocation5] sm:$0xf]
    %v54 = vld [vmem:[#allocation7] sm:$0xff]
    %v55 = vld [vmem:[#allocation7 + $0x8] sm:$0xff]
    %v56 = vld [vmem:[#allocation7 + $0x10] sm:$0xff]
    %v57 = vld [vmem:[#allocation7 + $0x18] sm:$0xff]
    %v58 = vlaneseq
    %v59 = vshrl.u32 %v58, 7
    %v60 = vadd.s32 %v59, 8
    %v61 = vadd.s32 %v59, 16
    %v62 = vadd.s32 %v59, 24
    %v63 = vlaneseq
    %v64 = vshrl.u32 %v63, 7
    %v65 = vsub.s32 0, %v64
    %v66 = vrot.slane %v52, %v65
    %vm67 = vcmp.eq.s32.totalorder %v66, %v59
    %vm68 = vcmp.eq.s32.totalorder %v66, %v60
    %vm69 = vcmp.eq.s32.totalorder %v66, %v61
    %vm70 = vcmp.eq.s32.totalorder %v66, %v62
    %v71 = vlaneseq
    %v72 = vshrl.u32 %v71, 7
    %v73 = vsub.s32 0, %v72
    %v74 = vrot.slane %v53, %v73
    %v75 = vsel %vm67, %v74, 0.0
    %v76 = vsel %vm68, %v74, 0.0
    %v77 = vsel %vm69, %v74, 0.0
    %v78 = vsel %vm70, %v74, 0.0
    %v79 = vadd.f32 %v75, 0.0
    %v80 = vadd.f32 %v76, 0.0
    %v81 = vadd.f32 %v77, 0.0
    %v82 = vadd.f32 %v78, 0.0
    %v83 = vlaneseq
    %v84 = vshrl.u32 %v83, 7
    %v85 = vsub.s32 1, %v84
    %v86 = vrot.slane %v52, %v85
    %vm87 = vcmp.eq.s32.totalorder %v86, %v59
    %vm88 = vcmp.eq.s32.totalorder %v86, %v60
    %vm89 = vcmp.eq.s32.totalorder %v86, %v61
    %vm90 = vcmp.eq.s32.totalorder %v86, %v62
    %v91 = vlaneseq
    %v92 = vshrl.u32 %v91, 7
    %v93 = vsub.s32 1, %v92
    %v94 = vrot.slane %v53, %v93
    %v95 = vsel %vm87, %v94, 0.0
    %v96 = vsel %vm88, %v94, 0.0
    %v97 = vsel %vm89, %v94, 0.0
    %v98 = vsel %vm90, %v94, 0.0
    %v99 = vadd.f32 %v79, %v95
    %v100 = vadd.f32 %v80, %v96
    %v101 = vadd.f32 %v81, %v97
    %v102 = vadd.f32 %v82, %v98
    %v103 = vlaneseq
    %v104 = vshrl.u32 %v103, 7
    %v105 = vsub.s32 2, %v104
    %v106 = vrot.slane %v52, %v105
    %vm107 = vcmp.eq.s32.totalorder %v106, %v59
    %vm108 = vcmp.eq.s32.totalorder %v106, %v60
    %vm109 = vcmp.eq.s32.totalorder %v106, %v61
    %vm110 = vcmp.eq.s32.totalorder %v106, %v62
    %v111 = vlaneseq
    %v112 = vshrl.u32 %v111, 7
    %v113 = vsub.s32 2, %v112
    %v114 = vrot.slane %v53, %v113
    %v115 = vsel %vm107, %v114, 0.0
    %v116 = vsel %vm108, %v114, 0.0
    %v117 = vsel %vm109, %v114, 0.0
    %v118 = vsel %vm110, %v114, 0.0
    %v119 = vadd.f32 %v99, %v115
    %v120 = vadd.f32 %v100, %v116
    %v121 = vadd.f32 %v101, %v117
    %v122 = vadd.f32 %v102, %v118
    %v123 = vlaneseq
    %v124 = vshrl.u32 %v123, 7
    %v125 = vsub.s32 3, %v124
    %v126 = vrot.slane %v52, %v125
    %vm127 = vcmp.eq.s32.totalorder %v126, %v59
    %vm128 = vcmp.eq.s32.totalorder %v126, %v60
    %vm129 = vcmp.eq.s32.totalorder %v126, %v61
    %vm130 = vcmp.eq.s32.totalorder %v126, %v62
    %v131 = vlaneseq
    %v132 = vshrl.u32 %v131, 7
    %v133 = vsub.s32 3, %v132
    %v134 = vrot.slane %v53, %v133
    %v135 = vsel %vm127, %v134, 0.0
    %v136 = vsel %vm128, %v134, 0.0
    %v137 = vsel %vm129, %v134, 0.0
    %v138 = vsel %vm130, %v134, 0.0
    %v139 = vadd.f32 %v119, %v135
    %v140 = vadd.f32 %v120, %v136
    %v141 = vadd.f32 %v121, %v137
    %v142 = vadd.f32 %v122, %v138
    %vm143 = vcmask 261120
    %v145 = vsel %vm143, %v54, 0
    %v148 = vsel %vm143, %v55, 0
    %v151 = vsel %vm143, %v56, 0
    %v154 = vsel %vm143, %v57, 0
    %156 = vmatprep.subr.mxu0 0.0
    %157 = vmatpush1.msra.mxu0 %v139
    %158 = vmatprep.subr.mxu0 0.0
    %159 = vmatpush1.msra.mxu0 %v140
    %160 = vmatprep.subr.mxu0 0.0
    %161 = vmatpush1.msra.mxu0 %v141
    %162 = vmatprep.subr.mxu0 0.0
    %163 = vmatpush1.msra.mxu0 %v142
    %164 = vmatprep.subr.mxu0 0.0
    %165 = vmatpush1.msra.mxu0 0.0
    %166 = vmatprep.subr.mxu0 0.0
    %167 = vmatpush1.msra.mxu0 0.0
    %168 = vmatprep.subr.mxu0 0.0
    %169 = vmatpush1.msra.mxu0 0.0
    %170 = vmatprep.subr.mxu0 0.0
    %171 = vmatpush1.msra.mxu0 0.0
    %172 = vmatprep.subr.mxu0 0.0
    %173 = vmatpush1.msra.mxu0 0.0
    %174 = vmatprep.subr.mxu0 0.0
    %175 = vmatpush1.msra.mxu0 0.0
    %176 = vmatprep.subr.mxu0 0.0
    %177 = vmatpush1.msra.mxu0 0.0
    %178 = vmatprep.subr.mxu0 0.0
    %179 = vmatpush1.msra.mxu0 0.0
    %180 = vmatprep.subr.mxu0 0.0
    %181 = vmatpush1.msra.mxu0 0.0
    %182 = vmatprep.subr.mxu0 0.0
    %183 = vmatpush1.msra.mxu0 0.0
    %184 = vmatprep.subr.mxu0 0.0
    %185 = vmatpush1.msra.mxu0 0.0
    %186 = vmatprep.subr.mxu0 0.0
    %187 = vmatpush1.msra.mxu0 0.0
    %188 = vmatprep.subr.mxu0 0.0
    %189 = vmatpush1.msra.mxu0 0.0
    %190 = vmatprep.subr.mxu0 0.0
    %191 = vmatpush1.msra.mxu0 0.0
    %192 = vmatprep.subr.mxu0 0.0
    %193 = vmatpush1.msra.mxu0 0.0
    %194 = vmatprep.subr.mxu0 0.0
    %195 = vmatpush1.msra.mxu0 0.0
    %196 = vmatprep.subr.mxu0 0.0
    %197 = vmatpush1.msra.mxu0 0.0
    %198 = vmatprep.subr.mxu0 0.0
    %199 = vmatpush1.msra.mxu0 0.0
    %200 = vmatprep.subr.mxu0 0.0
    %201 = vmatpush1.msra.mxu0 0.0
    %202 = vmatprep.subr.mxu0 0.0
    %203 = vmatpush1.msra.mxu0 0.0
    %204 = vmatprep.subr.mxu0 0.0
    %205 = vmatpush1.msra.mxu0 0.0
    %206 = vmatprep.subr.mxu0 0.0
    %207 = vmatpush1.msra.mxu0 0.0
    %208 = vmatprep.subr.mxu0 0.0
    %209 = vmatpush1.msra.mxu0 0.0
    %210 = vmatprep.subr.mxu0 0.0
    %211 = vmatpush1.msra.mxu0 0.0
    %212 = vmatprep.subr.mxu0 0.0
    %213 = vmatpush1.msra.mxu0 0.0
    %214 = vmatprep.subr.mxu0 0.0
    %215 = vmatpush1.msra.mxu0 0.0
    %216 = vmatprep.subr.mxu0 0.0
    %217 = vmatpush1.msra.mxu0 0.0
    %218 = vmatprep.subr.mxu0 0.0
    %219 = vmatpush1.msra.mxu0 0.0
    %220 = vmatprep.mubr.f32.mxu0 0.0
    %221 = vmatmul.mubr.f32.gmra.mrb[0].mxu0 %v145
    %v222 = vpop.f32.mrb[0].mxu0
    %v223 = vadd.f32 0.0, %v222
    %v224 = vpop.f32.mrb[0].mxu0
    %225 = vmatprep.mubr.f32.mxu0 0.0
    %226 = vmatmul.mubr.f32.gmra.mrb[0].mxu0 %v148
    %v227 = vpop.f32.mrb[0].mxu0
    %v228 = vadd.f32 0.0, %v227
    %v229 = vpop.f32.mrb[0].mxu0
    %230 = vmatprep.mubr.f32.mxu0 0.0
    %231 = vmatmul.mubr.f32.gmra.mrb[0].mxu0 %v151
    %v232 = vpop.f32.mrb[0].mxu0
    %v233 = vadd.f32 0.0, %v232
    %v234 = vpop.f32.mrb[0].mxu0
    %235 = vmatprep.mubr.f32.mxu0 0.0
    %236 = vmatmul.mubr.f32.gmra.mrb[0].mxu0 %v154
    %v237 = vpop.f32.mrb[0].mxu0
    %v238 = vadd.f32 0.0, %v237
    %v239 = vpop.f32.mrb[0].mxu0
    %240 = vdwg.mxu0
    %241 = vst [vmem:[#allocation8] sm:$0xff] %v223
    %242 = vst [vmem:[#allocation8 + $0x8] sm:$0xff] %v228
    %243 = vst [vmem:[#allocation8 + $0x10] sm:$0xff] %v233
    %244 = vst [vmem:[#allocation8 + $0x18] sm:$0xff] %v238
    // Predicated region
    $region26: #{tpu_custom_call.1} parent=1 // pred_check
      _
    $region27: #{tpu_custom_call.1} parent=1 // pred_check_branch
      %246 = sbr.rel (0) target = $region29
    $region28: #{tpu_custom_call.1} parent=1 // pred_region
      %s248 = ssub.s32 512, 512
      %249 = vsyncadd [#allocation4], %s248
      %s250 = sshll.u32 [#allocation8], 4
      %s251 = int_to_ptr.vmem [resolvable:$true] %s250
      %256 = dma.vmem_to_hbm [thread:$0]  %s251, 512, %s3, [#allocation4], 128, 128, 8
    $region29: #{tpu_custom_call.1} parent=1 // pred_fallthru
      _
    // Predicated region
    $region30: #{tpu_custom_call.1} parent=1 // pred_check
      _
    $region31: #{tpu_custom_call.1} parent=1 // pred_check_branch
      %258 = sbr.rel (0) target = $region33
    $region32: #{tpu_custom_call.1} parent=1 // pred_region
      %259 = dma.done [#allocation4], 512
    $region33: #{tpu_custom_call.1} parent=1 // pred_fallthru
      _
    %260 = vsyncpa [#allocation3], 1
    %261 = vsyncpa [#allocation6], 1
    %262 = vsyncpa [#allocation4], 1

</llo_original>
